<compile_context>
chip_gen: v5e
topology: v5e:2x2
jax: 0.10.0
libtpu: 0.0.40
codegen_flags: <defaults>
</compile_context>

<pallas_src>
import jax
import jax.numpy as jnp
from jax.experimental import pallas as pl
from jax.experimental.pallas import tpu as pltpu


def _chip_budgets():
    """(per-buffer tile byte target, scoped-VMEM limit, prefer batch split) per TPU generation."""
    try:
        kind = jax.devices()[0].device_kind.lower()
    except Exception:
        kind = ""
    if "v5" in kind:   # v5e: 16 MiB default scoped limit -> modest tiles + raised limit
        return 3 << 20, 64 << 20, False
    if "v6" in kind:   # v6e: 128 MiB physical, 32 MiB default scoped limit
        return 6 << 20, 64 << 20, False
    if "v7" in kind:   # v7x: only 64 MiB physical per TC -> big tiles but headroom; 2 TCs
        return 8 << 20, 48 << 20, True
    return 4 << 20, 48 << 20, False


def _preemphasis_kernel(coef_ref, x_ref, o_ref, carry_ref):
    """coef_ref: (1,) SMEM scalar. x_ref/o_ref: (bm, bt) VMEM tiles. carry_ref: (bm, 1) halo."""
    j = pl.program_id(1)                      # time-tile index (innermost grid axis, sequential)
    x = x_ref[...]                            # (bm, bt)
    bt = x.shape[1]
    coef = coef_ref[0].astype(x.dtype)        # keep bf16/fp16 math packed on v6e/v7x

    # Reflect boundary for the very first time-tile: x[-1] := x[1].
    @pl.when(j == 0)
    def _():
        carry_ref[...] = x_ref[:, 1:2]

    prev0 = carry_ref[...]                    # (bm, 1): sample immediately left of this tile

    # x_prev[t] = x[t-1]; lane 0 comes from the halo via a VPU select so a single
    # full-width lane-dense store suffices (no narrow masked store).
    x_prev = pltpu.roll(x, shift=1, axis=1)
    lane = jax.lax.broadcasted_iota(jnp.int32, x.shape, dimension=1)
    x_prev = jnp.where(lane == 0, prev0, x_prev)
    o_ref[...] = (x - coef * x_prev).astype(o_ref.dtype)

    # Carry this tile's last column as the halo for the next time-tile.
    carry_ref[...] = x[:, bt - 1:bt]


def _pick_tiles(B: int, T: int, itemsize: int, target_bytes: int, prefer_split: bool):
    """Sublane-aligned bm and lane-dense bt under a per-buffer byte budget."""
    base = {4: 8, 2: 16, 1: 32}.get(itemsize, 8)   # sub-32-bit dtypes pack along sublanes

    # ---- batch tile (sublanes) ----
    if B % base != 0:
        bm = B                                      # full-dim block is always legal
    else:
        bt_min = 128 if T % 128 == 0 else T
        byte_cap = max(base, (target_bytes // max(1, bt_min * itemsize)) // base * base)
        best_any, best_split = base, None
        m = base
        lim = min(B, byte_cap)
        while m <= lim:
            if B % m == 0:
                best_any = m
                if B // m >= 2:
                    best_split = m                  # leaves >=2 blocks on the parallel axis
            m += base
        bm = best_split if (prefer_split and best_split is not None) else best_any

    # ---- time tile (lanes) ----
    if T % 128 != 0:
        bt = T                                      # full-dim block is always legal
    else:
        cap = max(128, (target_bytes // max(1, bm * itemsize)) // 128 * 128)
        bt, t = 128, 128
        lim = min(T, cap)                           # byte budget (not a lane cap) binds bt
        while t <= lim:
            if T % t == 0:
                bt = t
            t += 128
    return bm, bt


def pre_emphasis(x: jax.Array, coef: float = 0.97, *, bm: int | None = None,
                 bt: int | None = None, donate: bool = False) -> jax.Array:
    """Pallas TPU implementation of PreEmphasis.forward for 2-D input (B, T)."""
    assert x.ndim == 2, "The number of dimensions of inputs tensor must be 2!"
    B, T = x.shape
    assert T >= 2, "reflect padding needs T >= 2"

    tile_bytes, vmem_limit, prefer_split = _chip_budgets()
    itemsize = jnp.dtype(x.dtype).itemsize
    auto_bm, auto_bt = _pick_tiles(B, T, itemsize, tile_bytes, prefer_split)
    if bm is None:
        bm = auto_bm
    if bt is None:
        bt = auto_bt
    assert B % bm == 0 and T % bt == 0
    assert bt >= 2, "time tile must hold at least 2 samples for the reflect boundary"

    # coef lives in SMEM via scalar prefetch: no Mosaic recompile per coef value.
    coef_arr = jnp.asarray([coef], dtype=jnp.float32)

    extra = {}
    if donate:
        # arg 0 is the prefetched coef scalar, arg 1 is x -> alias x's buffer onto the output.
        extra["input_output_aliases"] = {1: 0}

    grid = (B // bm, T // bt)
    return pl.pallas_call(
        _preemphasis_kernel,
        out_shape=jax.ShapeDtypeStruct((B, T), x.dtype),
        grid_spec=pltpu.PrefetchScalarGridSpec(
            num_scalar_prefetch=1,
            grid=grid,
            in_specs=[pl.BlockSpec((bm, bt), lambda i, j, coef_sref: (i, j))],
            out_specs=pl.BlockSpec((bm, bt), lambda i, j, coef_sref: (i, j)),
            scratch_shapes=[pltpu.VMEM((bm, 1), x.dtype)],   # 1-element halo carry
        ),
        compiler_params=pltpu.CompilerParams(
            # batch axis parallel (sharded across TCs on v7x); time axis must stay
            # sequential ("arbitrary") because of the halo carry scratch.
            dimension_semantics=("parallel", "arbitrary"),
            vmem_limit_bytes=vmem_limit,
        ),
        **extra,
    )(coef_arr, x)


def _reference(x: jnp.ndarray, coef: float = 0.97) -> jnp.ndarray:
    # Pure-JAX reference mirroring torch: reflect-pad left by 1, conv1d with [-coef, 1.0].
    padded = jnp.concatenate([x[:, 1:2], x], axis=1)
    return -coef * padded[:, :-1] + 1.0 * padded[:, 1:]


if __name__ == "__main__":
    coef = 0.97

    # "flipped_filter" buffer from __init__ (shape (1, 1, 2)); its values [-coef, 1.0]
    # are realized as the shifted elementwise op inside the kernel.
    flipped_filter = jnp.array([-coef, 1.0], dtype=jnp.float32).reshape(1, 1, 2)
    del flipped_filter  # documented for parity with the torch module; not needed at runtime

    # Small shape consistent with the module: (batch, time).
    B, T = 8, 256
    x = jax.random.normal(jax.random.PRNGKey(0), (B, T), dtype=jnp.float32)
    y = jax.block_until_ready(pre_emphasis(x, coef=coef))
    assert y.shape == (B, T)
    assert jnp.allclose(y, _reference(x, coef), atol=1e-6, rtol=1e-6)

    # Explicitly exercise the time-tiled (halo-carry) path and batch tiling.
    x2 = jax.random.normal(jax.random.PRNGKey(1), (16, 512), dtype=jnp.float32)
    y2 = jax.block_until_ready(pre_emphasis(x2, coef=coef, bm=8, bt=128))
    assert jnp.allclose(y2, _reference(x2, coef), atol=1e-6, rtol=1e-6)

    # Non-multiple-of-128 time axis -> full-dim time block path.
    x3 = jax.random.normal(jax.random.PRNGKey(2), (8, 300), dtype=jnp.float32)
    y3 = jax.block_until_ready(pre_emphasis(x3, coef=coef))
    assert jnp.allclose(y3, _reference(x3, coef), atol=1e-6, rtol=1e-6)

    # bf16 path: coef is cast to the input dtype inside the kernel (packed 16-bit math).
    x4 = jax.random.normal(jax.random.PRNGKey(3), (16, 384), dtype=jnp.bfloat16)
    y4 = jax.block_until_ready(pre_emphasis(x4, coef=coef))
    ref4 = _reference(x4.astype(jnp.float32), coef)
    assert jnp.allclose(y4.astype(jnp.float32), ref4, atol=5e-2, rtol=5e-2)

    print("KERNEL_OK")
</pallas_src>

<mosaic_0001>
module attributes {stable_mosaic.version = 11 : i64} {
  func.func @_preemphasis_kernel(%arg0: i32, %arg1: i32, %arg2: memref<1xf32, #tpu.memory_space<smem>>, %arg3: memref<8x256xf32, #tpu.memory_space<vmem>>, %arg4: memref<8x256xf32, #tpu.memory_space<vmem>>, %arg5: memref<8x1xf32, #tpu.memory_space<vmem>>) attributes {dimension_semantics = [#tpu.dimension_semantics<parallel>, #tpu.dimension_semantics<arbitrary>], iteration_bounds = array<i64: 1, 1>, scalar_prefetch = 1 : i64, scratch_operands = 1 : i64, tpu.core_type = #tpu.core_type<tc>, window_params = [{transform_indices = @transform_0, window_bounds = array<i64: 8, 256>}, {transform_indices = @transform_1, window_bounds = array<i64: 8, 256>}]} {
    %c0 = arith.constant 0 : index
    %c0_0 = arith.constant 0 : index
    %0 = vector.load %arg3[%c0, %c0_0] : memref<8x256xf32, #tpu.memory_space<vmem>>, vector<8x256xf32>
    %c0_1 = arith.constant 0 : index
    %1 = memref.load %arg2[%c0_1] : memref<1xf32, #tpu.memory_space<smem>>
    %c0_i32 = arith.constant 0 : i32
    %2 = arith.cmpi eq, %arg1, %c0_i32 : i32
    %3 = arith.extui %2 : i1 to i32
    %c0_i32_2 = arith.constant 0 : i32
    %4 = arith.cmpi ne, %3, %c0_i32_2 : i32
    scf.if %4 {
      %c0_10 = arith.constant 0 : index
      %c1 = arith.constant 1 : index
      %19 = vector.load %arg3[%c0_10, %c1] : memref<8x256xf32, #tpu.memory_space<vmem>>, vector<8x1xf32>
      %c0_11 = arith.constant 0 : index
      %c0_12 = arith.constant 0 : index
      %20 = vector.load %arg5[%c0_11, %c0_12] : memref<8x1xf32, #tpu.memory_space<vmem>>, vector<8x1xf32>
      tpu.vector_store %arg5[%c0_11, %c0_12], %19 {strides = array<i32>} : memref<8x1xf32, #tpu.memory_space<vmem>>, vector<8x1xf32>,
    } else {
    }
    %c0_3 = arith.constant 0 : index
    %c0_4 = arith.constant 0 : index
    %5 = vector.load %arg5[%c0_3, %c0_4] : memref<8x1xf32, #tpu.memory_space<vmem>>, vector<8x1xf32>
    %c1_i32 = arith.constant 1 : i32
    %6 = tpu.dynamic_rotate %0 by %c1_i32 dim 1 : vector<8x256xf32>, i32 -> vector<8x256xf32>
    %7 = tpu.iota {dimensions = array<i32: 1>} : vector<8x256xi32>
    %c0_i32_5 = arith.constant 0 : i32
    %8 = vector.broadcast %c0_i32_5 : i32 to vector<8x256xi32>
    %9 = arith.cmpi eq, %7, %8 : vector<8x256xi32>
    %10 = vector.shape_cast %5 : vector<8x1xf32> to vector<8x1xf32>
    %11 = vector.broadcast %10 : vector<8x1xf32> to vector<8x256xf32>
    %12 = arith.select %9, %11, %6 : vector<8x256xi1>, vector<8x256xf32>
    %13 = vector.broadcast %1 : f32 to vector<8x256xf32>
    %14 = arith.mulf %13, %12 : vector<8x256xf32>
    %15 = arith.subf %0, %14 : vector<8x256xf32>
    %c0_6 = arith.constant 0 : index
    %c0_7 = arith.constant 0 : index
    %16 = vector.load %arg4[%c0_6, %c0_7] : memref<8x256xf32, #tpu.memory_space<vmem>>, vector<8x256xf32>
    tpu.vector_store %arg4[%c0_6, %c0_7], %15 {strides = array<i32>} : memref<8x256xf32, #tpu.memory_space<vmem>>, vector<8x256xf32>,
    %17 = vector.extract_strided_slice %0 {offsets = [0, 255], sizes = [8, 1], strides = [1, 1]} : vector<8x256xf32> to vector<8x1xf32>
    %c0_8 = arith.constant 0 : index
    %c0_9 = arith.constant 0 : index
    %18 = vector.load %arg5[%c0_8, %c0_9] : memref<8x1xf32, #tpu.memory_space<vmem>>, vector<8x1xf32>
    tpu.vector_store %arg5[%c0_8, %c0_9], %17 {strides = array<i32>} : memref<8x1xf32, #tpu.memory_space<vmem>>, vector<8x1xf32>,
    return
  }
  func.func @transform_0(%arg0: i32, %arg1: i32, %arg2: memref<1xf32, #tpu.memory_space<smem>>) -> (i32, i32) {
    %c0_i32 = arith.constant 0 : i32
    return %arg0, %arg1 : i32, i32
  }
  func.func @transform_1(%arg0: i32, %arg1: i32, %arg2: memref<1xf32, #tpu.memory_space<smem>>) -> (i32, i32) {
    %c0_i32 = arith.constant 0 : i32
    return %arg0, %arg1 : i32, i32
  }
}

</mosaic_0001>

<llo_original>
// kernel: tpu_custom_call.1
$region0: #{tpu_custom_call.1}
  #allocation0 [shape = 'u32[]', space=smem, size = 0x4, offset = 0x4, fixed_abs, tag = 'smem constant byte address 0x4 - core index']
  #allocation1 [shape = 'u32[72,128]{1,0:T(1,128)}', space=vmem, size = 0x9000, scoped, tag = 'internal scratch']
  #allocation2 [shape = 'f32[8,1]{1,0:T(8,128)}', space=vmem, size = 0x1000, scoped, tag = 'scratch operand']
  #allocation3 [shape = 's32[1]{0}', space=sflag, size = 0x4, scoped, tag = 'scoped memory for tpu_custom_call.1']
  #allocation4 [shape = 'f32[1]{0:T(128)S(6)}', space=smem, size = 0x200, scoped, tag = 'prefetched SMEM operand 0']
  %s0 = inlined_call_operand.<no memory space> [shape: f32[1], index: 0, kind: input, shape index: {}]
  %s1 = inlined_call_operand.hbm [shape: f32[8,256], index: 1, kind: input, shape index: {}]
  %s2 = inlined_call_operand.hbm [shape: f32[8,256], index: 2, kind: output, shape index: {}]
  %s3 = sld [smem:[#allocation0]]
  $region22: #{tpu_custom_call.1} parent=0
    _
  %s5 = ssub.s32 1, %s3
  %s6 = scalar_select 0, %s5, %s3
  %7 = sst [smem:[#allocation4]] %s0
  $region1: #{tpu_custom_call.1} parent=0
    #allocation5 [shape = 'u8[8192]{0}', space=vmem, size = 0x2000, scoped, tag = 'input window, operand 1, single buffered']
    #allocation6 [shape = 's32[1]{0}', space=sflag, size = 0x4, scoped, tag = 'scoped memory for tpu_custom_call.1']
    #allocation7 [shape = 's32[1]{0}', space=sflag, size = 0x4, scoped, tag = 'scoped memory for tpu_custom_call.1']
    #allocation8 [shape = 'u8[8192]{0}', space=vmem, size = 0x2000, scoped, tag = 'output window, operand 0, single buffered']
    %8 = vsyncpa [#allocation6], 0
    %9 = vsyncpa [#allocation7], 0
    // Predicated region
    $region2: #{tpu_custom_call.1} parent=1 // pred_check
      _
    $region3: #{tpu_custom_call.1} parent=1 // pred_check_branch
      %11 = sbr.rel (0) target = $region5
    $region4: #{tpu_custom_call.1} parent=1 // pred_region
      %13 = vsyncadd [#allocation6], 0
      %s15 = sshll.u32 %s1, 4
      %s16 = int_to_ptr.hbm [resolvable:$true] %s15
      %s17 = sshll.u32 [#allocation5], 4
      %s18 = int_to_ptr.vmem [resolvable:$true] %s17
      %20 = dma.hbm_to_vmem [thread:$0]  %s16, 256, %s18, [#allocation6]
    $region5: #{tpu_custom_call.1} parent=1 // pred_fallthru
      _
    // Predicated region
    $region6: #{tpu_custom_call.1} parent=1 // pred_check
      _
    $region7: #{tpu_custom_call.1} parent=1 // pred_check_branch
      %22 = sbr.rel (0) target = $region9
    $region8: #{tpu_custom_call.1} parent=1 // pred_region
      %24 = dma.done [#allocation6], 256
    $region9: #{tpu_custom_call.1} parent=1 // pred_fallthru
      _
    %v25 = vld [vmem:[#allocation5] sm:$0xff]
    %v26 = vld [vmem:[#allocation5 + $0x8] sm:$0xff]
    %s27 = sld [smem:[#allocation4]]
    %p28 = scmp.eq.s32.totalorder 0, 0
    // Predicated region
    $region10: #{tpu_custom_call.1} parent=1 // pred_check
      %p29 = pneg %p28
    $region11: #{tpu_custom_call.1} parent=1 // pred_check_branch
      %31 = sbr.rel (%p29) target = $region13
    $region12: #{tpu_custom_call.1} parent=1 // pred_region
      %v32 = vld [vmem:[#allocation5] sm:$0xff]
      %34 = vrot.lane.b32.xlu0 %v32, 127
      %v35 = vpop.permute.xlu0 %34
      %vm37 = vcmask 7168
      %38 = vst.msk [vmem:[#allocation2] sm:$0xff] %vm37, %v35
    $region13: #{tpu_custom_call.1} parent=1 // pred_fallthru
      _
    %v39 = vld [vmem:[#allocation2] sm:$0xff]
    %40 = vrot.lane.b32.xlu0 %v25, 1
    %v41 = vpop.permute.xlu0 %40
    %42 = vrot.lane.b32.xlu0 %v26, 1
    %v43 = vpop.permute.xlu0 %42
    %v44 = vlaneseq
    %v45 = vand.u32 %v44, 127
    %vm46 = vcmp.lt.s32.totalorder %v45, 1
    %v47 = vsel %vm46, %v41, %v43
    %v48 = vsel %vm46, %v43, %v41
    %v49 = vadd.s32 %v45, 128
    %vm50 = vcmp.eq.s32.totalorder %v45, 0
    %vm51 = vcmp.eq.s32.totalorder %v49, 0
    %53 = vset.pattern.permute.xlu0 0
    %54 = vperm.xlu0 %53, %v39
    %v55 = vpop.permute.xlu0 %54
    %v57 = vsel %vm50, %v55, %v48
    %v58 = vsel %vm51, %v55, %v47
    %v59 = vstv %s27
    %v60 = vmul.f32 %v59, %v57
    %v61 = vmul.f32 %v59, %v58
    %v62 = vsub.f32 %v25, %v60
    %v63 = vsub.f32 %v26, %v61
    %64 = vst [vmem:[#allocation8] sm:$0xff] %v62
    %65 = vst [vmem:[#allocation8 + $0x8] sm:$0xff] %v63
    %67 = vrot.lane.b32.xlu0 %v26, 1
    %v68 = vpop.permute.xlu0 %67
    %vm70 = vcmask 7168
    %71 = vst.msk [vmem:[#allocation2] sm:$0xff] %vm70, %v68
    // Predicated region
    $region14: #{tpu_custom_call.1} parent=1 // pred_check
      _
    $region15: #{tpu_custom_call.1} parent=1 // pred_check_branch
      %73 = sbr.rel (0) target = $region17
    $region16: #{tpu_custom_call.1} parent=1 // pred_region
      %75 = vsyncadd [#allocation7], 0
      %s77 = sshll.u32 [#allocation8], 4
      %s78 = int_to_ptr.vmem [resolvable:$true] %s77
      %s79 = sshll.u32 %s2, 4
      %s80 = int_to_ptr.hbm [resolvable:$true] %s79
      %82 = dma.vmem_to_hbm [thread:$0]  %s78, 256, %s80, [#allocation7]
    $region17: #{tpu_custom_call.1} parent=1 // pred_fallthru
      _
    // Predicated region
    $region18: #{tpu_custom_call.1} parent=1 // pred_check
      _
    $region19: #{tpu_custom_call.1} parent=1 // pred_check_branch
      %84 = sbr.rel (0) target = $region21
    $region20: #{tpu_custom_call.1} parent=1 // pred_region
      %86 = dma.done [#allocation7], 256
    $region21: #{tpu_custom_call.1} parent=1 // pred_fallthru
      _
    %87 = vsyncpa [#allocation6], 1
    %88 = vsyncpa [#allocation7], 1

</llo_original>
